<compile_context>
chip_gen: v5e
topology: v5e:2x2
jax: 0.10.0
libtpu: 0.0.40
codegen_flags: <defaults>
</compile_context>

<pallas_src>
import functools

import jax
import jax.numpy as jnp
from jax.experimental import pallas as pl
from jax.experimental.pallas import tpu as pltpu


def _round_up(x, m):
    return (x + m - 1) // m * m


def _pick_row_tile(tlen, target=256):
    """Largest multiple of 8 <= target that divides tlen, else tlen itself."""
    t = min(target, tlen)
    t -= t % 8
    while t >= 8:
        if tlen % t == 0:
            return t
        t -= 8
    return tlen


def copy_generator_kernel(*refs, v_col, do_expand):
    if do_expand:
        (hidden_ref, attn_ref, expand_ref, srcmap_ref,
         w_aug_ref, bias_ref, mask_ref, out_prob_ref, copy_prob_ref) = refs
    else:
        (hidden_ref, attn_ref, srcmap_ref,
         w_aug_ref, bias_ref, mask_ref, out_prob_ref, copy_prob_ref) = refs

    hidden = hidden_ref[...]                                   # (TM, D) bf16

    # --- fused main matmul: [W_lin | w_copy | 0-pad] -> (TM, Vp), f32 accum
    logits_aug = jnp.dot(hidden, w_aug_ref[...],
                         preferred_element_type=jnp.float32)
    logits_aug = logits_aug + bias_ref[...]                    # b_lin/b_copy folded

    # p(copy) comes from the fused extra column (no separate (D,1) matmul).
    p_copy = jax.nn.sigmoid(logits_aug[:, v_col:v_col + 1])    # (TM, 1)

    # additive {0, -inf} mask: pad_idx column and every column >= V (copy col
    # + lane padding), so the softmax over the padded width is exact.
    logits = logits_aug + mask_ref[...]
    m = jnp.max(logits, axis=1, keepdims=True)
    e = jnp.exp(logits - m)
    inv = pl.reciprocal(jnp.sum(e, axis=1, keepdims=True), approx=True)
    prob = e * inv                                             # pad cols are 0

    out_prob_ref[...] = (prob * (1.0 - p_copy)).astype(out_prob_ref.dtype)

    # --- attention: ConvTranspose1d expansion as a tiny matmul (bias via the
    # appended ones column of attn), already lane-padded to Sp.
    if do_expand:
        attn_exp = jnp.dot(attn_ref[...], expand_ref[...],
                           preferred_element_type=jnp.float32)  # (TM, Sp)
    else:
        attn_exp = attn_ref[...].astype(jnp.float32)

    mul_attn = (attn_exp * p_copy).astype(srcmap_ref.dtype)     # (TM, Sp) bf16
    copy_prob_ref[...] = jnp.dot(
        mul_attn, srcmap_ref[...],
        preferred_element_type=jnp.float32).astype(copy_prob_ref.dtype)


def _build_expansion(conv_w, conv_b, l_in, slen, slen_p):
    """(l_in + 1, slen_p) matrix implementing ConvTranspose1d(1,1,3,stride=3).

    Rows 0..l_in-1 place the 3 conv taps at columns 3*i+j; the last row holds
    the conv bias on the first `slen` columns (output_padding columns get the
    bias only; lane-padding columns stay 0 so mul_attn is 0 there).
    """
    w3 = jnp.asarray(conv_w, jnp.float32).reshape(3)
    rows = jnp.repeat(jnp.arange(l_in), 3)
    cols = jnp.arange(3 * l_in)
    E = jnp.zeros((l_in, slen_p), jnp.float32).at[rows, cols].set(
        jnp.tile(w3, l_in))
    bias_row = jnp.where(jnp.arange(slen_p) < slen,
                         jnp.asarray(conv_b, jnp.float32).reshape(()), 0.0)
    return jnp.concatenate([E, bias_row[None, :].astype(jnp.float32)], axis=0)


def copy_generator(hidden, attn, src_map, params, *, pad_idx, conv_first,
                   row_tile_target=256):
    hidden = jnp.asarray(hidden, jnp.float32)
    attn = jnp.asarray(attn, jnp.float32)
    src_map = jnp.asarray(src_map, jnp.float32)

    N, D = hidden.shape
    slen, batch, cvocab = src_map.shape
    V = params["w_lin"].shape[0]
    assert N % batch == 0
    tlen = N // batch

    Vp = _round_up(V + 1, 128)     # +1 fused p_copy column, lane-dense
    Sp = _round_up(slen, 128)
    Cp = _round_up(cvocab, 128)

    # ---- batch-major row layout: (tlen, batch, ...) -> (batch, tlen, ...)
    hidden_b = hidden.reshape(tlen, batch, D).transpose(1, 0, 2)
    hidden_b = hidden_b.astype(jnp.bfloat16)

    if conv_first:
        l_in = attn.shape[1]
        rem = slen % 3
        assert 3 * l_in + rem == slen
        if rem == 0:
            cw, cb = params["conv_w"], params["conv_b"]
        elif rem == 1:
            cw, cb = params["conv_pad1_w"], params["conv_pad1_b"]
        else:
            cw, cb = params["conv_pad2_w"], params["conv_pad2_b"]
        expand = _build_expansion(cw, cb, l_in, slen, Sp).astype(jnp.bfloat16)
        attn_in = jnp.concatenate([attn, jnp.ones((N, 1), jnp.float32)], axis=1)
        l_attn = l_in + 1
    else:
        assert attn.shape[1] == slen
        expand = None
        attn_in = jnp.pad(attn, ((0, 0), (0, Sp - slen)))
        l_attn = Sp
    attn_b = attn_in.reshape(tlen, batch, l_attn).transpose(1, 0, 2)
    attn_b = attn_b.astype(jnp.bfloat16)

    # ---- src_map: (slen, batch, cvocab) -> (batch, Sp, Cp), zero padded (exact in bf16: one-hot)
    src_map_b = jnp.transpose(src_map, (1, 0, 2))
    src_map_b = jnp.pad(src_map_b, ((0, 0), (0, Sp - slen), (0, Cp - cvocab)))
    src_map_b = src_map_b.astype(jnp.bfloat16)

    # ---- fused weights / bias row / additive softmax mask row
    w_aug = jnp.zeros((D, Vp), jnp.float32)
    w_aug = w_aug.at[:, :V].set(params["w_lin"].T.astype(jnp.float32))
    w_aug = w_aug.at[:, V].set(params["w_cp"].reshape(D).astype(jnp.float32))
    w_aug = w_aug.astype(jnp.bfloat16)

    bias_row = jnp.zeros((1, Vp), jnp.float32)
    bias_row = bias_row.at[0, :V].set(params["b_lin"].astype(jnp.float32))
    bias_row = bias_row.at[0, V].set(params["b_cp"].reshape(()).astype(jnp.float32))

    col = jnp.arange(Vp)
    mask_row = jnp.where((col == pad_idx) | (col >= V), -jnp.inf, 0.0)
    mask_row = mask_row.astype(jnp.float32).reshape(1, Vp)

    TM = _pick_row_tile(tlen, row_tile_target)
    grid = (batch, tlen // TM)

    in_arrays = [hidden_b, attn_b]
    in_specs = [
        pl.BlockSpec((None, TM, D), lambda b, i: (b, i, 0)),        # hidden
        pl.BlockSpec((None, TM, l_attn), lambda b, i: (b, i, 0)),   # attn (+1s)
    ]
    if conv_first:
        in_arrays.append(expand)
        in_specs.append(pl.BlockSpec((l_attn, Sp), lambda b, i: (0, 0)))
    in_arrays += [src_map_b, w_aug, bias_row, mask_row]
    in_specs += [
        pl.BlockSpec((None, Sp, Cp), lambda b, i: (b, 0, 0)),       # src_map[b]
        pl.BlockSpec((D, Vp), lambda b, i: (0, 0)),                 # [W_lin|w_cp]
        pl.BlockSpec((1, Vp), lambda b, i: (0, 0)),                 # biases
        pl.BlockSpec((1, Vp), lambda b, i: (0, 0)),                 # -inf mask
    ]

    kernel = functools.partial(copy_generator_kernel, v_col=V,
                               do_expand=conv_first)

    out_prob_p, copy_prob_p = pl.pallas_call(
        kernel,
        out_shape=(jax.ShapeDtypeStruct((batch, tlen, Vp), jnp.float32),
                   jax.ShapeDtypeStruct((batch, tlen, Cp), jnp.float32)),
        grid_spec=pltpu.PrefetchScalarGridSpec(
            num_scalar_prefetch=0,
            grid=grid,
            in_specs=in_specs,
            out_specs=(pl.BlockSpec((None, TM, Vp), lambda b, i: (b, i, 0)),
                       pl.BlockSpec((None, TM, Cp), lambda b, i: (b, i, 0))),
        ),
        compiler_params=pltpu.CompilerParams(
            dimension_semantics=("parallel", "parallel")),
    )(*in_arrays)

    # wrapper-side layout plumbing back to the module's (t, b) row order
    out_prob = out_prob_p[:, :, :V].transpose(1, 0, 2).reshape(N, V)
    copy_prob = copy_prob_p[:, :, :cvocab].transpose(1, 0, 2).reshape(N, cvocab)
    return jnp.concatenate([out_prob, copy_prob], axis=1)


def copy_generator_reference(hidden, attn, src_map, params, *, pad_idx, conv_first):
    slen, batch, cvocab = src_map.shape
    if conv_first:
        rem = slen % 3
        if rem == 0:
            cw, cb = params["conv_w"], params["conv_b"]
        elif rem == 1:
            cw, cb = params["conv_pad1_w"], params["conv_pad1_b"]
        else:
            cw, cb = params["conv_pad2_w"], params["conv_pad2_b"]
        w3 = cw.reshape(3)
        expanded = (attn[:, :, None] * w3[None, None, :]).reshape(attn.shape[0], -1)
        expanded = jnp.pad(expanded, ((0, 0), (0, rem)))
        attn = expanded + cb.reshape(())
    logits = hidden @ params["w_lin"].T + params["b_lin"]
    logits = logits.at[:, pad_idx].set(-jnp.inf)
    prob = jax.nn.softmax(logits, axis=1)
    p_copy = jax.nn.sigmoid(hidden @ params["w_cp"].T + params["b_cp"])
    out_prob = prob * (1.0 - p_copy)
    mul_attn = attn * p_copy
    tlen = hidden.shape[0] // batch
    ma = mul_attn.reshape(tlen, batch, slen).transpose(1, 0, 2)   # (b, t, s)
    sm = src_map.transpose(1, 0, 2)                               # (b, s, c)
    cp = jnp.einsum("bts,bsc->btc", ma, sm).transpose(1, 0, 2).reshape(-1, cvocab)
    return jnp.concatenate([out_prob, cp], axis=1)


if __name__ == "__main__":
    # small shapes: batch=2, tlen=4 -> N=8, input_size=32, vocab=16,
    # slen=13 (13 % 3 == 1 -> conv_transpose_pad1 branch, L_in=4), cvocab=8
    batch, tlen, D, V, cvocab = 2, 4, 32, 16, 8
    slen = 13
    l_in = (slen - slen % 3) // 3
    pad_idx = 1
    N = batch * tlen

    key = jax.random.PRNGKey(0)
    ks = jax.random.split(key, 12)
    params = {
        "w_lin": jax.random.normal(ks[0], (V, D), jnp.float32) * 0.1,
        "b_lin": jax.random.normal(ks[1], (V,), jnp.float32) * 0.1,
        "w_cp": jax.random.normal(ks[2], (1, D), jnp.float32) * 0.1,
        "b_cp": jax.random.normal(ks[3], (1,), jnp.float32) * 0.1,
        "conv_w": jax.random.normal(ks[4], (1, 1, 3), jnp.float32) * 0.3,
        "conv_b": jax.random.normal(ks[5], (1,), jnp.float32) * 0.1,
        "conv_pad1_w": jax.random.normal(ks[6], (1, 1, 3), jnp.float32) * 0.3,
        "conv_pad1_b": jax.random.normal(ks[7], (1,), jnp.float32) * 0.1,
        "conv_pad2_w": jax.random.normal(ks[8], (1, 1, 3), jnp.float32) * 0.3,
        "conv_pad2_b": jax.random.normal(ks[9], (1,), jnp.float32) * 0.1,
    }

    hidden = jax.random.normal(ks[10], (N, D), jnp.float32)
    attn = jax.nn.softmax(jax.random.normal(ks[11], (N, l_in), jnp.float32), axis=-1)
    src_idx = jax.random.randint(jax.random.PRNGKey(1), (slen, batch), 0, cvocab)
    src_map = jax.nn.one_hot(src_idx, cvocab, dtype=jnp.float32)  # (slen, batch, cvocab)

    out = copy_generator(hidden, attn, src_map, params,
                         pad_idx=pad_idx, conv_first=True)
    out = jax.block_until_ready(out)

    ref = copy_generator_reference(hidden, attn, src_map, params,
                                   pad_idx=pad_idx, conv_first=True)
    assert out.shape == (N, V + cvocab)
    # bf16 MXU operands (f32 accumulation) -> slightly looser tolerance
    assert float(jnp.max(jnp.abs(out - ref))) < 2e-2, "mismatch vs JAX reference"

    print("KERNEL_OK")
</pallas_src>

<mosaic_0001>
module attributes {stable_mosaic.version = 11 : i64} {
  func.func @copy_generator_kernel(%arg0: i32, %arg1: i32, %arg2: memref<1x4x32xbf16, #tpu.memory_space<vmem>>, %arg3: memref<1x4x5xbf16, #tpu.memory_space<vmem>>, %arg4: memref<5x128xbf16, #tpu.memory_space<vmem>>, %arg5: memref<1x128x128xbf16, #tpu.memory_space<vmem>>, %arg6: memref<32x128xbf16, #tpu.memory_space<vmem>>, %arg7: memref<1x128xf32, #tpu.memory_space<vmem>>, %arg8: memref<1x128xf32, #tpu.memory_space<vmem>>, %arg9: memref<1x4x128xf32, #tpu.memory_space<vmem>>, %arg10: memref<1x4x128xf32, #tpu.memory_space<vmem>>) attributes {dimension_semantics = [#tpu.dimension_semantics<parallel>, #tpu.dimension_semantics<parallel>], iteration_bounds = array<i64: 2, 1>, scalar_prefetch = 0 : i64, scratch_operands = 0 : i64, tpu.core_type = #tpu.core_type<tc>, window_params = [{transform_indices = @transform_0, window_bounds = array<i64: 1, 4, 32>}, {transform_indices = @transform_1, window_bounds = array<i64: 1, 4, 5>}, {pipeline_mode = #tpu.pipeline_mode<synchronous>, transform_indices = @transform_2, window_bounds = array<i64: 5, 128>}, {transform_indices = @transform_3, window_bounds = array<i64: 1, 128, 128>}, {pipeline_mode = #tpu.pipeline_mode<synchronous>, transform_indices = @transform_4, window_bounds = array<i64: 32, 128>}, {pipeline_mode = #tpu.pipeline_mode<synchronous>, transform_indices = @transform_5, window_bounds = array<i64: 1, 128>}, {pipeline_mode = #tpu.pipeline_mode<synchronous>, transform_indices = @transform_6, window_bounds = array<i64: 1, 128>}, {transform_indices = @transform_7, window_bounds = array<i64: 1, 4, 128>}, {transform_indices = @transform_8, window_bounds = array<i64: 1, 4, 128>}]} {
    %c0 = arith.constant 0 : index
    %c0_0 = arith.constant 0 : index
    %c0_1 = arith.constant 0 : index
    %0 = vector.load %arg2[%c0, %c0_0, %c0_1] : memref<1x4x32xbf16, #tpu.memory_space<vmem>>, vector<1x4x32xbf16>
    %1 = vector.shape_cast %0 : vector<1x4x32xbf16> to vector<4x32xbf16>
    %c0_2 = arith.constant 0 : index
    %c0_3 = arith.constant 0 : index
    %2 = vector.load %arg6[%c0_2, %c0_3] : memref<32x128xbf16, #tpu.memory_space<vmem>>, vector<32x128xbf16>
    %cst = arith.constant dense<0.000000e+00> : vector<4x128xf32>
    %3 = tpu.matmul %1, %2, %cst {dimension_numbers = #tpu.dot_dimension_numbers<[1], [0], [0], [1], [0, 0, 1, 1], [], []>} : vector<4x32xbf16>, vector<32x128xbf16>, vector<4x128xf32> -> vector<4x128xf32>
    %c0_4 = arith.constant 0 : index
    %c0_5 = arith.constant 0 : index
    %4 = vector.load %arg7[%c0_4, %c0_5] : memref<1x128xf32, #tpu.memory_space<vmem>>, vector<1x128xf32>
    %5 = vector.broadcast %4 : vector<1x128xf32> to vector<4x128xf32>
    %6 = arith.addf %3, %5 : vector<4x128xf32>
    %7 = vector.extract_strided_slice %6 {offsets = [0, 16], sizes = [4, 1], strides = [1, 1]} : vector<4x128xf32> to vector<4x1xf32>
    %8 = arith.negf %7 : vector<4x1xf32>
    %9 = math.exp %8 : vector<4x1xf32>
    %cst_6 = arith.constant 1.000000e+00 : f32
    %10 = vector.broadcast %cst_6 : f32 to vector<4x1xf32>
    %11 = arith.addf %10, %9 : vector<4x1xf32>
    %12 = arith.divf %10, %11 : vector<4x1xf32>
    %c0_7 = arith.constant 0 : index
    %c0_8 = arith.constant 0 : index
    %13 = vector.load %arg8[%c0_7, %c0_8] : memref<1x128xf32, #tpu.memory_space<vmem>>, vector<1x128xf32>
    %14 = vector.broadcast %13 : vector<1x128xf32> to vector<4x128xf32>
    %15 = arith.addf %6, %14 : vector<4x128xf32>
    %cst_9 = arith.constant dense<0xFF800000> : vector<4xf32>
    %16 = vector.multi_reduction <maximumf>, %15, %cst_9 [1] : vector<4x128xf32> to vector<4xf32>
    %17 = vector.shape_cast %16 : vector<4xf32> to vector<4x1xf32>
    %18 = vector.broadcast %17 : vector<4x1xf32> to vector<4x128xf32>
    %19 = arith.subf %15, %18 : vector<4x128xf32>
    %20 = math.exp %19 : vector<4x128xf32>
    %cst_10 = arith.constant dense<0.000000e+00> : vector<4xf32>
    %21 = vector.multi_reduction <add>, %20, %cst_10 [1] : vector<4x128xf32> to vector<4xf32>
    %22 = vector.shape_cast %21 : vector<4xf32> to vector<4x1xf32>
    %23 = tpu.reciprocal %22 {approx = true} : vector<4x1xf32> -> vector<4x1xf32>
    %24 = vector.broadcast %23 : vector<4x1xf32> to vector<4x128xf32>
    %25 = arith.mulf %20, %24 : vector<4x128xf32>
    %cst_11 = arith.constant 1.000000e+00 : f32
    %26 = vector.broadcast %cst_11 : f32 to vector<4x1xf32>
    %27 = arith.subf %26, %12 : vector<4x1xf32>
    %28 = vector.broadcast %27 : vector<4x1xf32> to vector<4x128xf32>
    %29 = arith.mulf %25, %28 : vector<4x128xf32>
    %c0_12 = arith.constant 0 : index
    %c0_13 = arith.constant 0 : index
    %c0_14 = arith.constant 0 : index
    %30 = vector.load %arg9[%c0_12, %c0_13, %c0_14] : memref<1x4x128xf32, #tpu.memory_space<vmem>>, vector<1x4x128xf32>
    %31 = vector.shape_cast %30 : vector<1x4x128xf32> to vector<4x128xf32>
    %32 = vector.shape_cast %29 : vector<4x128xf32> to vector<1x4x128xf32>
    tpu.vector_store %arg9[%c0_12, %c0_13, %c0_14], %32 {strides = array<i32>} : memref<1x4x128xf32, #tpu.memory_space<vmem>>, vector<1x4x128xf32>,
    %c0_15 = arith.constant 0 : index
    %c0_16 = arith.constant 0 : index
    %c0_17 = arith.constant 0 : index
    %33 = vector.load %arg3[%c0_15, %c0_16, %c0_17] : memref<1x4x5xbf16, #tpu.memory_space<vmem>>, vector<1x4x5xbf16>
    %34 = vector.shape_cast %33 : vector<1x4x5xbf16> to vector<4x5xbf16>
    %c0_18 = arith.constant 0 : index
    %c0_19 = arith.constant 0 : index
    %35 = vector.load %arg4[%c0_18, %c0_19] : memref<5x128xbf16, #tpu.memory_space<vmem>>, vector<5x128xbf16>
    %cst_20 = arith.constant dense<0.000000e+00> : vector<4x128xf32>
    %36 = tpu.matmul %34, %35, %cst_20 {dimension_numbers = #tpu.dot_dimension_numbers<[1], [0], [0], [1], [0, 0, 1, 1], [], []>} : vector<4x5xbf16>, vector<5x128xbf16>, vector<4x128xf32> -> vector<4x128xf32>
    %37 = vector.broadcast %12 : vector<4x1xf32> to vector<4x128xf32>
    %38 = arith.mulf %36, %37 : vector<4x128xf32>
    %39 = arith.truncf %38 : vector<4x128xf32> to vector<4x128xbf16>
    %c0_21 = arith.constant 0 : index
    %c0_22 = arith.constant 0 : index
    %c0_23 = arith.constant 0 : index
    %40 = vector.load %arg5[%c0_21, %c0_22, %c0_23] : memref<1x128x128xbf16, #tpu.memory_space<vmem>>, vector<1x128x128xbf16>
    %41 = vector.shape_cast %40 : vector<1x128x128xbf16> to vector<128x128xbf16>
    %cst_24 = arith.constant dense<0.000000e+00> : vector<4x128xf32>
    %42 = tpu.matmul %39, %41, %cst_24 {dimension_numbers = #tpu.dot_dimension_numbers<[1], [0], [0], [1], [0, 0, 1, 1], [], []>} : vector<4x128xbf16>, vector<128x128xbf16>, vector<4x128xf32> -> vector<4x128xf32>
    %c0_25 = arith.constant 0 : index
    %c0_26 = arith.constant 0 : index
    %c0_27 = arith.constant 0 : index
    %43 = vector.load %arg10[%c0_25, %c0_26, %c0_27] : memref<1x4x128xf32, #tpu.memory_space<vmem>>, vector<1x4x128xf32>
    %44 = vector.shape_cast %43 : vector<1x4x128xf32> to vector<4x128xf32>
    %45 = vector.shape_cast %42 : vector<4x128xf32> to vector<1x4x128xf32>
    tpu.vector_store %arg10[%c0_25, %c0_26, %c0_27], %45 {strides = array<i32>} : memref<1x4x128xf32, #tpu.memory_space<vmem>>, vector<1x4x128xf32>,
    return
  }
  func.func @transform_0(%arg0: i32, %arg1: i32) -> (i32, i32, i32) {
    %c0_i32 = arith.constant 0 : i32
    %c0_i32_0 = arith.constant 0 : i32
    return %arg0, %arg1, %c0_i32 : i32, i32, i32
  }
  func.func @transform_1(%arg0: i32, %arg1: i32) -> (i32, i32, i32) {
    %c0_i32 = arith.constant 0 : i32
    %c0_i32_0 = arith.constant 0 : i32
    return %arg0, %arg1, %c0_i32 : i32, i32, i32
  }
  func.func @transform_2(%arg0: i32, %arg1: i32) -> (i32, i32) {
    %c0_i32 = arith.constant 0 : i32
    %c0_i32_0 = arith.constant 0 : i32
    %c0_i32_1 = arith.constant 0 : i32
    return %c0_i32, %c0_i32_0 : i32, i32
  }
  func.func @transform_3(%arg0: i32, %arg1: i32) -> (i32, i32, i32) {
    %c0_i32 = arith.constant 0 : i32
    %c0_i32_0 = arith.constant 0 : i32
    %c0_i32_1 = arith.constant 0 : i32
    return %arg0, %c0_i32, %c0_i32_0 : i32, i32, i32
  }
  func.func @transform_4(%arg0: i32, %arg1: i32) -> (i32, i32) {
    %c0_i32 = arith.constant 0 : i32
    %c0_i32_0 = arith.constant 0 : i32
    %c0_i32_1 = arith.constant 0 : i32
    return %c0_i32, %c0_i32_0 : i32, i32
  }
  func.func @transform_5(%arg0: i32, %arg1: i32) -> (i32, i32) {
    %c0_i32 = arith.constant 0 : i32
    %c0_i32_0 = arith.constant 0 : i32
    %c0_i32_1 = arith.constant 0 : i32
    return %c0_i32, %c0_i32_0 : i32, i32
  }
  func.func @transform_6(%arg0: i32, %arg1: i32) -> (i32, i32) {
    %c0_i32 = arith.constant 0 : i32
    %c0_i32_0 = arith.constant 0 : i32
    %c0_i32_1 = arith.constant 0 : i32
    return %c0_i32, %c0_i32_0 : i32, i32
  }
  func.func @transform_7(%arg0: i32, %arg1: i32) -> (i32, i32, i32) {
    %c0_i32 = arith.constant 0 : i32
    %c0_i32_0 = arith.constant 0 : i32
    return %arg0, %arg1, %c0_i32 : i32, i32, i32
  }
  func.func @transform_8(%arg0: i32, %arg1: i32) -> (i32, i32, i32) {
    %c0_i32 = arith.constant 0 : i32
    %c0_i32_0 = arith.constant 0 : i32
    return %arg0, %arg1, %c0_i32 : i32, i32, i32
  }
}

</mosaic_0001>

<llo_original>
// kernel: tpu_custom_call.1
$region0: #{tpu_custom_call.1}
  #allocation0 [shape = 'u32[]', space=smem, size = 0x4, offset = 0x4, fixed_abs, tag = 'smem constant byte address 0x4 - core index']
  #allocation1 [shape = 'u32[72,128]{1,0:T(1,128)}', space=vmem, size = 0x9000, scoped, tag = 'internal scratch']
  %s0 = inlined_call_operand.hbm [shape: bf16[2,4,32], index: 0, kind: input, shape index: {}]
  %s1 = inlined_call_operand.hbm [shape: bf16[2,4,5], index: 1, kind: input, shape index: {}]
  %s2 = inlined_call_operand.hbm [shape: bf16[5,128], index: 2, kind: input, shape index: {}]
  %s3 = inlined_call_operand.hbm [shape: bf16[2,128,128], index: 3, kind: input, shape index: {}]
  %s4 = inlined_call_operand.hbm [shape: bf16[32,128], index: 4, kind: input, shape index: {}]
  %s5 = inlined_call_operand.vmem [shape: f32[1,128], index: 5, kind: input, shape index: {}]
  %s6 = inlined_call_operand.vmem [shape: f32[1,128], index: 6, kind: input, shape index: {}]
  %s7 = inlined_call_operand.hbm [shape: f32[2,4,128], index: 7, kind: output, shape index: {0}]
  %s8 = inlined_call_operand.hbm [shape: f32[2,4,128], index: 8, kind: output, shape index: {1}]
  %9 = xla_tuple %s7, %s8
  %s10 = sld [smem:[#allocation0]]
  $region89: #{tpu_custom_call.1} parent=0
    _
  %s12 = ssub.s32 1, %s10
  %s13 = scalar_select 0, %s12, %s10
  $region1: #{tpu_custom_call.1} parent=0
    #allocation2 [shape = 'u8[2048]{0}', space=vmem, size = 0x800, scoped, tag = 'input window, operand 0']
    #allocation3 [shape = 's32[2]{0}', space=sflag, size = 0x8, scoped, tag = 'scoped memory for tpu_custom_call.1']
    #allocation4 [shape = 's32[2]{0}', space=sflag, size = 0x8, scoped, tag = 'scoped memory for tpu_custom_call.1']
    #allocation5 [shape = 'u8[2048]{0}', space=vmem, size = 0x800, scoped, tag = 'input window, operand 1']
    #allocation6 [shape = 's32[2]{0}', space=sflag, size = 0x8, scoped, tag = 'scoped memory for tpu_custom_call.1']
    #allocation7 [shape = 'u8[2048]{0}', space=vmem, size = 0x800, scoped, tag = 'input window, operand 2, single buffered']
    #allocation8 [shape = 'u8[65536]{0}', space=vmem, size = 0x10000, scoped, tag = 'input window, operand 3']
    #allocation9 [shape = 's32[2]{0}', space=sflag, size = 0x8, scoped, tag = 'scoped memory for tpu_custom_call.1']
    #allocation10 [shape = 'u8[8192]{0}', space=vmem, size = 0x2000, scoped, tag = 'input window, operand 4, single buffered']
    #allocation11 [shape = 'u8[4096]{0}', space=vmem, size = 0x1000, scoped, tag = 'output window, operand 0']
    #allocation12 [shape = 'u8[4096]{0}', space=vmem, size = 0x1000, scoped, tag = 'output window, operand 1']
    #allocation13 [shape = 's32[2]{0}', space=sflag, size = 0x8, scoped, tag = 'scoped memory for tpu_custom_call.1']
    %14 = vsyncpa [#allocation3], 0
    %s15 = scalar_lea.sflag [#allocation3], 1
    %16 = vsyncpa %s15, 0
    %17 = vsyncpa [#allocation6], 0
    %s18 = scalar_lea.sflag [#allocation6], 1
    %19 = vsyncpa %s18, 0
    %20 = vsyncpa [#allocation9], 0
    %s21 = scalar_lea.sflag [#allocation9], 1
    %22 = vsyncpa %s21, 0
    %23 = vsyncpa [#allocation4], 0
    %s24 = scalar_lea.sflag [#allocation4], 1
    %25 = vsyncpa %s24, 0
    %26 = vsyncpa [#allocation13], 0
    %s27 = scalar_lea.sflag [#allocation13], 1
    %28 = vsyncpa %s27, 0
    loop: start=0, step=1, limit=4
    $region2: #{tpu_custom_call.1} parent=1 // loop_pre_header
      _
    $region3: #{tpu_custom_call.1} parent=1 // loop_header
      %s30 = sphi 0, %s34
      %p31 = scmp.ge.s32.totalorder %s30, 4
      %s37 = sphi 0, %s49
      %s38 = sphi 0, %s45
      %s39 = sphi 0, %s37
      %s40 = sphi 0, %s38
      %s41 = sphi 0, %s39
      %s42 = sphi 0, %s40
      %s54 = sphi 0, %s56
      %s57 = sphi 0, %s54
      %s58 = sphi 0, %s57
      %s74 = sphi 0, %s58
      %s82 = sphi 0, %s84
      %s85 = sphi 0, %s82
      %s86 = sphi 0, %s85
      %s102 = sphi 0, %s86
      %s106 = sphi 0, %s106
      %s108 = sphi 0, %s106
      %s109 = sphi 0, %s108
      %s123 = sphi 0, %s109
      %s129 = sphi 0, %s131
      %s132 = sphi 0, %s129
      %s133 = sphi 0, %s132
      %s149 = sphi 0, %s133
      %s153 = sphi 0, %s153
      %s155 = sphi 0, %s153
      %s156 = sphi 0, %s155
      %s170 = sphi 0, %s156
      %s174 = sphi 0, %s174
      %s176 = sphi 0, %s174
      %s177 = sphi 0, %s176
      %s191 = sphi 0, %s177
      %s195 = sphi 0, %s195
      %s197 = sphi 0, %s195
      %s198 = sphi 0, %s197
      %s212 = sphi 0, %s198
      %s220 = sphi 0, %s222
      %s223 = sphi 0, %s220
      %s224 = sphi 0, %s223
      %s240 = sphi 0, %s224
      %s248 = sphi 0, %s250
      %s251 = sphi 0, %s248
      %s252 = sphi 0, %s251
      %s268 = sphi 0, %s252
    $region4: #{tpu_custom_call.1} parent=1 // loop_header_branch
      %33 = sbr.rel (%p31) target = $region8
    $region5: #{tpu_custom_call.1} parent=1 // loop_body
      %s35 = ssub.s32 %s30, 1
      %s36 = ssub.s32 %s30, 2
      %s43 = sadd.s32 1, %s38
      %p44 = scmp.ge.s32.totalorder %s43, 1
      %s45 = scalar_select %p44, 0, %s43
      %s46 = sadd.s32 1, %s37
      %s47 = scalar_select %p44, %s46, %s37
      %p48 = scmp.ge.s32.totalorder %s47, 2
      %s49 = scalar_select %p48, 0, %s47
      %s50 = ssub.s32 %s37, %s49
      %s51 = ssub.s32 %s38, %s45
      %s52 = sor.u32 %s50, %s51
      %p53 = scmp.eq.s32.totalorder %s52, 0
      %s55 = sadd.s32 %s54, 1
      %s56 = scalar_select %p53, %s54, %s55
      %p59 = pneg %p53
      %p60 = scmp.eq.s32.totalorder %s30, 1
      %p61 = por %p59, %p60
      %p62 = scmp.ne.s32.totalorder %s54, %s57
      %p63 = scmp.eq.s32.totalorder %s30, 0
      %p64 = por %p62, %p63
      %p65 = scmp.ne.s32.totalorder %s54, %s57
      %p66 = scmp.eq.s32.totalorder %s35, 1
      %p67 = por %p65, %p66
      %p68 = scmp.ne.s32.totalorder %s57, %s58
      %p69 = scmp.eq.s32.totalorder %s35, 0
      %p70 = por %p68, %p69
      %p71 = scmp.ne.s32.totalorder %s57, %s58
      %p72 = scmp.eq.s32.totalorder %s36, 1
      %p73 = por %p71, %p72
      %p75 = scmp.ne.s32.totalorder %s58, %s74
      %p76 = scmp.eq.s32.totalorder %s36, 0
      %p77 = por %p75, %p76
      %s78 = ssub.s32 %s37, %s49
      %s79 = ssub.s32 %s38, %s45
      %s80 = sor.u32 %s78, %s79
      %p81 = scmp.eq.s32.totalorder %s80, 0
      %s83 = sadd.s32 %s82, 1
      %s84 = scalar_select %p81, %s82, %s83
      %p87 = pneg %p81
      %p88 = scmp.eq.s32.totalorder %s30, 1
      %p89 = por %p87, %p88
      %p90 = scmp.ne.s32.totalorder %s82, %s85
      %p91 = scmp.eq.s32.totalorder %s30, 0
      %p92 = por %p90, %p91
      %p93 = scmp.ne.s32.totalorder %s82, %s85
      %p94 = scmp.eq.s32.totalorder %s35, 1
      %p95 = por %p93, %p94
      %p96 = scmp.ne.s32.totalorder %s85, %s86
      %p97 = scmp.eq.s32.totalorder %s35, 0
      %p98 = por %p96, %p97
      %p99 = scmp.ne.s32.totalorder %s85, %s86
      %p100 = scmp.eq.s32.totalorder %s36, 1
      %p101 = por %p99, %p100
      %p103 = scmp.ne.s32.totalorder %s86, %s102
      %p104 = scmp.eq.s32.totalorder %s36, 0
      %p105 = por %p103, %p104
      %s107 = sadd.s32 %s106, 1
      %p110 = scmp.eq.s32.totalorder %s30, 1
      %p111 = scmp.ne.s32.totalorder %s106, %s108
      %p112 = scmp.eq.s32.totalorder %s30, 0
      %p113 = por %p111, %p112
      %p114 = scmp.ne.s32.totalorder %s106, %s108
      %p115 = scmp.eq.s32.totalorder %s35, 1
      %p116 = por %p114, %p115
      %p117 = scmp.ne.s32.totalorder %s108, %s109
      %p118 = scmp.eq.s32.totalorder %s35, 0
      %p119 = por %p117, %p118
      %p120 = scmp.ne.s32.totalorder %s108, %s109
      %p121 = scmp.eq.s32.totalorder %s36, 1
      %p122 = por %p120, %p121
      %p124 = scmp.ne.s32.totalorder %s109, %s123
      %p125 = scmp.eq.s32.totalorder %s36, 0
      %p126 = por %p124, %p125
      %s127 = ssub.s32 %s37, %s49
      %p128 = scmp.eq.s32.totalorder %s127, 0
      %s130 = sadd.s32 %s129, 1
      %s131 = scalar_select %p128, %s129, %s130
      %p134 = pneg %p128
      %p135 = scmp.eq.s32.totalorder %s30, 1
      %p136 = por %p134, %p135
      %p137 = scmp.ne.s32.totalorder %s129, %s132
      %p138 = scmp.eq.s32.totalorder %s30, 0
      %p139 = por %p137, %p138
      %p140 = scmp.ne.s32.totalorder %s129, %s132
      %p141 = scmp.eq.s32.totalorder %s35, 1
      %p142 = por %p140, %p141
      %p143 = scmp.ne.s32.totalorder %s132, %s133
      %p144 = scmp.eq.s32.totalorder %s35, 0
      %p145 = por %p143, %p144
      %p146 = scmp.ne.s32.totalorder %s132, %s133
      %p147 = scmp.eq.s32.totalorder %s36, 1
      %p148 = por %p146, %p147
      %p150 = scmp.ne.s32.totalorder %s133, %s149
      %p151 = scmp.eq.s32.totalorder %s36, 0
      %p152 = por %p150, %p151
      %s154 = sadd.s32 %s153, 1
      %p157 = scmp.eq.s32.totalorder %s30, 1
      %p158 = scmp.ne.s32.totalorder %s153, %s155
      %p159 = scmp.eq.s32.totalorder %s30, 0
      %p160 = por %p158, %p159
      %p161 = scmp.ne.s32.totalorder %s153, %s155
      %p162 = scmp.eq.s32.totalorder %s35, 1
      %p163 = por %p161, %p162
      %p164 = scmp.ne.s32.totalorder %s155, %s156
      %p165 = scmp.eq.s32.totalorder %s35, 0
      %p166 = por %p164, %p165
      %p167 = scmp.ne.s32.totalorder %s155, %s156
      %p168 = scmp.eq.s32.totalorder %s36, 1
      %p169 = por %p167, %p168
      %p171 = scmp.ne.s32.totalorder %s156, %s170
      %p172 = scmp.eq.s32.totalorder %s36, 0
      %p173 = por %p171, %p172
      %s175 = sadd.s32 %s174, 1
      %p178 = scmp.eq.s32.totalorder %s30, 1
      %p179 = scmp.ne.s32.totalorder %s174, %s176
      %p180 = scmp.eq.s32.totalorder %s30, 0
      %p181 = por %p179, %p180
      %p182 = scmp.ne.s32.totalorder %s174, %s176
      %p183 = scmp.eq.s32.totalorder %s35, 1
      %p184 = por %p182, %p183
      %p185 = scmp.ne.s32.totalorder %s176, %s177
      %p186 = scmp.eq.s32.totalorder %s35, 0
      %p187 = por %p185, %p186
      %p188 = scmp.ne.s32.totalorder %s176, %s177
      %p189 = scmp.eq.s32.totalorder %s36, 1
      %p190 = por %p188, %p189
      %p192 = scmp.ne.s32.totalorder %s177, %s191
      %p193 = scmp.eq.s32.totalorder %s36, 0
      %p194 = por %p192, %p193
      %s196 = sadd.s32 %s195, 1
      %p199 = scmp.eq.s32.totalorder %s30, 1
      %p200 = scmp.ne.s32.totalorder %s195, %s197
      %p201 = scmp.eq.s32.totalorder %s30, 0
      %p202 = por %p200, %p201
      %p203 = scmp.ne.s32.totalorder %s195, %s197
      %p204 = scmp.eq.s32.totalorder %s35, 1
      %p205 = por %p203, %p204
      %p206 = scmp.ne.s32.totalorder %s197, %s198
      %p207 = scmp.eq.s32.totalorder %s35, 0
      %p208 = por %p206, %p207
      %p209 = scmp.ne.s32.totalorder %s197, %s198
      %p210 = scmp.eq.s32.totalorder %s36, 1
      %p211 = por %p209, %p210
      %p213 = scmp.ne.s32.totalorder %s198, %s212
      %p214 = scmp.eq.s32.totalorder %s36, 0
      %p215 = por %p213, %p214
      %s216 = ssub.s32 %s37, %s49
      %s217 = ssub.s32 %s38, %s45
      %s218 = sor.u32 %s216, %s217
      %p219 = scmp.eq.s32.totalorder %s218, 0
      %s221 = sadd.s32 %s220, 1
      %s222 = scalar_select %p219, %s220, %s221
      %p225 = pneg %p219
      %p226 = scmp.eq.s32.totalorder %s30, 1
      %p227 = por %p225, %p226
      %p228 = scmp.ne.s32.totalorder %s220, %s223
      %p229 = scmp.eq.s32.totalorder %s30, 0
      %p230 = por %p228, %p229
      %p231 = scmp.ne.s32.totalorder %s220, %s223
      %p232 = scmp.eq.s32.totalorder %s35, 1
      %p233 = por %p231, %p232
      %p234 = scmp.ne.s32.totalorder %s223, %s224
      %p235 = scmp.eq.s32.totalorder %s35, 0
      %p236 = por %p234, %p235
      %p237 = scmp.ne.s32.totalorder %s223, %s224
      %p238 = scmp.eq.s32.totalorder %s36, 1
      %p239 = por %p237, %p238
      %p241 = scmp.ne.s32.totalorder %s224, %s240
      %p242 = scmp.eq.s32.totalorder %s36, 0
      %p243 = por %p241, %p242
      %s244 = ssub.s32 %s37, %s49
      %s245 = ssub.s32 %s38, %s45
      %s246 = sor.u32 %s244, %s245
      %p247 = scmp.eq.s32.totalorder %s246, 0
      %s249 = sadd.s32 %s248, 1
      %s250 = scalar_select %p247, %s248, %s249
      %p253 = pneg %p247
      %p254 = scmp.eq.s32.totalorder %s30, 1
      %p255 = por %p253, %p254
      %p256 = scmp.ne.s32.totalorder %s248, %s251
      %p257 = scmp.eq.s32.totalorder %s30, 0
      %p258 = por %p256, %p257
      %p259 = scmp.ne.s32.totalorder %s248, %s251
      %p260 = scmp.eq.s32.totalorder %s35, 1
      %p261 = por %p259, %p260
      %p262 = scmp.ne.s32.totalorder %s251, %s252
      %p263 = scmp.eq.s32.totalorder %s35, 0
      %p264 = por %p262, %p263
      %p265 = scmp.ne.s32.totalorder %s251, %s252
      %p266 = scmp.eq.s32.totalorder %s36, 1
      %p267 = por %p265, %p266
      %p269 = scmp.ne.s32.totalorder %s252, %s268
      %p270 = scmp.eq.s32.totalorder %s36, 0
      %p271 = por %p269, %p270
      %p272 = scmp.le.s32.totalorder 1, %s30
      %p273 = scmp.lt.s32.totalorder %s30, 3
      %p274 = pnand %p272, %p273
      %p275 = pneg %p274
      // Predicated region
      $region9: #{tpu_custom_call.1} parent=5 // pred_check
        _
      $region10: #{tpu_custom_call.1} parent=5 // pred_check_branch
        %277 = sbr.rel (%p274) target = $region12
      $region11: #{tpu_custom_call.1} parent=5 // pred_region
        %s278 = ssub.s32 %s30, 1
        // Predicated region
        $region13: #{tpu_custom_call.1} parent=11 // pred_check
          %p279 = pneg %p119
        $region14: #{tpu_custom_call.1} parent=11 // pred_check_branch
          %281 = sbr.rel (%p279) target = $region16
        $region15: #{tpu_custom_call.1} parent=11 // pred_region
          %283 = vsyncadd [#allocation6], 0
          %s285 = sshll.u32 %s2, 4
          %s286 = int_to_ptr.hbm [resolvable:$true] %s285
          %s287 = sshll.u32 [#allocation7], 4
          %s288 = int_to_ptr.vmem [resolvable:$true] %s287
          %290 = dma.hbm_to_vmem [thread:$0]  %s286, 64, %s288, [#allocation6]
        $region16: #{tpu_custom_call.1} parent=11 // pred_fallthru
          _
        // Predicated region
        $region17: #{tpu_custom_call.1} parent=11 // pred_check
          %p291 = pneg %p166
        $region18: #{tpu_custom_call.1} parent=11 // pred_check_branch
          %293 = sbr.rel (%p291) target = $region20
        $region19: #{tpu_custom_call.1} parent=11 // pred_region
          %295 = vsyncadd [#allocation9], 0
          %s296 = sshll.u32 %s4, 4
          %s297 = int_to_ptr.hbm [resolvable:$true] %s296
          %s298 = sshll.u32 [#allocation10], 4
          %s299 = int_to_ptr.vmem [resolvable:$true] %s298
          %304 = dma.hbm_to_vmem [thread:$0]  %s297, 256, %s299, [#allocation9], 64, 64, 4
        $region20: #{tpu_custom_call.1} parent=11 // pred_fallthru
          _
        // Predicated region
        $region21: #{tpu_custom_call.1} parent=11 // pred_check
          %p305 = pneg %p187
        $region22: #{tpu_custom_call.1} parent=11 // pred_check_branch
          %307 = sbr.rel (%p305) target = $region24
        $region23: #{tpu_custom_call.1} parent=11 // pred_region
          _
        $region24: #{tpu_custom_call.1} parent=11 // pred_fallthru
          _
        // Predicated region
        $region25: #{tpu_custom_call.1} parent=11 // pred_check
          %p308 = pneg %p208
        $region26: #{tpu_custom_call.1} parent=11 // pred_check_branch
          %310 = sbr.rel (%p308) target = $region28
        $region27: #{tpu_custom_call.1} parent=11 // pred_region
          _
        $region28: #{tpu_custom_call.1} parent=11 // pred_fallthru
          _
      $region12: #{tpu_custom_call.1} parent=5 // pred_fallthru
        _
      %p311 = scmp.lt.s32.totalorder %s30, 2
      // Predicated region
      $region29: #{tpu_custom_call.1} parent=5 // pred_check
        %p312 = pneg %p311
      $region30: #{tpu_custom_call.1} parent=5 // pred_check_branch
        %314 = sbr.rel (%p312) target = $region32
      $region31: #{tpu_custom_call.1} parent=5 // pred_region
        // Predicated region
        $region33: #{tpu_custom_call.1} parent=31 // pred_check
          %p315 = pneg %p64
        $region34: #{tpu_custom_call.1} parent=31 // pred_check_branch
          %317 = sbr.rel (%p315) target = $region36
        $region35: #{tpu_custom_call.1} parent=31 // pred_region
          %s318 = sand.u32 %s54, 1
          %s319 = scalar_lea.sflag [#allocation3], %s318
          %s320 = sand.u32 %s54, 1
          %s321 = smul.addr %s320, 2
          %s322 = scalar_lea.vmem [#allocation2], %s321
          %324 = vsyncadd %s319, 0
          %s325 = sadd.s32 %s38, %s37
          %s326 = smul.addr %s325, 2
          %s327 = scalar_lea.hbm %s0, %s326
          %s329 = sshll.u32 %s327, 4
          %s330 = int_to_ptr.hbm [resolvable:$true] %s329
          %s331 = sshll.u32 %s322, 4
          %s332 = int_to_ptr.vmem [resolvable:$true] %s331
          %334 = dma.hbm_to_vmem [thread:$0]  %s330, 32, %s332, %s319
        $region36: #{tpu_custom_call.1} parent=31 // pred_fallthru
          _
        // Predicated region
        $region37: #{tpu_custom_call.1} parent=31 // pred_check
          %p335 = pneg %p92
        $region38: #{tpu_custom_call.1} parent=31 // pred_check_branch
          %337 = sbr.rel (%p335) target = $region40
        $region39: #{tpu_custom_call.1} parent=31 // pred_region
          %s338 = sand.u32 %s30, 1
          %s339 = scalar_lea.sflag [#allocation6], %s338
          %s340 = sand.u32 %s82, 1
          %s341 = smul.addr %s340, 2
          %s342 = scalar_lea.vmem [#allocation5], %s341
          %344 = vsyncadd %s339, 0
          %s345 = sadd.s32 %s38, %s37
          %s346 = smul.addr %s345, 2
          %s347 = scalar_lea.hbm %s1, %s346
          %s349 = sshll.u32 %s347, 4
          %s350 = int_to_ptr.hbm [resolvable:$true] %s349
          %s351 = sshll.u32 %s342, 4
          %s352 = int_to_ptr.vmem [resolvable:$true] %s351
          %354 = dma.hbm_to_vmem [thread:$0]  %s350, 32, %s352, %s339
        $region40: #{tpu_custom_call.1} parent=31 // pred_fallthru
          _
        // Predicated region
        $region41: #{tpu_custom_call.1} parent=31 // pred_check
          %p355 = pneg %p139
        $region42: #{tpu_custom_call.1} parent=31 // pred_check_branch
          %357 = sbr.rel (%p355) target = $region44
        $region43: #{tpu_custom_call.1} parent=31 // pred_region
          %s358 = sand.u32 %s30, 1
          %s359 = scalar_lea.sflag [#allocation9], %s358
          %s360 = sand.u32 %s129, 1
          %s361 = smul.addr %s360, 64
          %s362 = scalar_lea.vmem [#allocation8], %s361
          %364 = vsyncadd %s359, 0
          %s365 = smul.addr %s37, 16
          %s366 = smul.addr %s365, 4
          %s367 = scalar_lea.hbm %s3, %s366
          %s368 = sshll.u32 %s367, 4
          %s369 = int_to_ptr.hbm [resolvable:$true] %s368
          %s370 = sshll.u32 %s362, 4
          %s371 = int_to_ptr.vmem [resolvable:$true] %s370
          %376 = dma.hbm_to_vmem [thread:$0]  %s369, 1024, %s371, %s359, 64, 64, 4
        $region44: #{tpu_custom_call.1} parent=31 // pred_fallthru
          _
      $region32: #{tpu_custom_call.1} parent=5 // pred_fallthru
        _
      %p377 = scmp.le.s32.totalorder 1, %s30
      %p378 = scmp.lt.s32.totalorder %s30, 3
      %p379 = pnand %p377, %p378
      %p380 = pneg %p379
      // Predicated region
      $region45: #{tpu_custom_call.1} parent=5 // pred_check
        _
      $region46: #{tpu_custom_call.1} parent=5 // pred_check_branch
        %382 = sbr.rel (%p379) target = $region48
      $region47: #{tpu_custom_call.1} parent=5 // pred_region
        %s383 = ssub.s32 %s30, 1
        %s384 = sand.u32 %s57, 1
        %s385 = scalar_lea.sflag [#allocation3], %s384
        %s386 = sand.u32 %s57, 1
        %s387 = smul.addr %s386, 2
        %s388 = scalar_lea.vmem [#allocation2], %s387
        // Predicated region
        $region49: #{tpu_custom_call.1} parent=47 // pred_check
          %p389 = pneg %p70
        $region50: #{tpu_custom_call.1} parent=47 // pred_check_branch
          %391 = sbr.rel (%p389) target = $region52
        $region51: #{tpu_custom_call.1} parent=47 // pred_region
          %393 = dma.done %s385, 32
        $region52: #{tpu_custom_call.1} parent=47 // pred_fallthru
          _
        %s394 = sand.u32 %s35, 1
        %s395 = scalar_lea.sflag [#allocation6], %s394
        %s396 = sand.u32 %s85, 1
        %s397 = smul.addr %s396, 2
        %s398 = scalar_lea.vmem [#allocation5], %s397
        // Predicated region
        $region53: #{tpu_custom_call.1} parent=47 // pred_check
          %p399 = pneg %p98
        $region54: #{tpu_custom_call.1} parent=47 // pred_check_branch
          %401 = sbr.rel (%p399) target = $region56
        $region55: #{tpu_custom_call.1} parent=47 // pred_region
          %403 = dma.done %s395, 32
        $region56: #{tpu_custom_call.1} parent=47 // pred_fallthru
          _
        // Predicated region
        $region57: #{tpu_custom_call.1} parent=47 // pred_check
          %p404 = pneg %p119
        $region58: #{tpu_custom_call.1} parent=47 // pred_check_branch
          %406 = sbr.rel (%p404) target = $region60
        $region59: #{tpu_custom_call.1} parent=47 // pred_region
          %408 = dma.done [#allocation6], 64
        $region60: #{tpu_custom_call.1} parent=47 // pred_fallthru
          _
        %s409 = sand.u32 %s35, 1
        %s410 = scalar_lea.sflag [#allocation9], %s409
        %s411 = sand.u32 %s132, 1
        %s412 = smul.addr %s411, 64
        %s413 = scalar_lea.vmem [#allocation8], %s412
        // Predicated region
        $region61: #{tpu_custom_call.1} parent=47 // pred_check
          %p414 = pneg %p145
        $region62: #{tpu_custom_call.1} parent=47 // pred_check_branch
          %416 = sbr.rel (%p414) target = $region64
        $region63: #{tpu_custom_call.1} parent=47 // pred_region
          %418 = dma.done %s410, 1024
        $region64: #{tpu_custom_call.1} parent=47 // pred_fallthru
          _
        // Predicated region
        $region65: #{tpu_custom_call.1} parent=47 // pred_check
          %p419 = pneg %p166
        $region66: #{tpu_custom_call.1} parent=47 // pred_check_branch
          %421 = sbr.rel (%p419) target = $region68
        $region67: #{tpu_custom_call.1} parent=47 // pred_region
          %423 = dma.done [#allocation9], 256
        $region68: #{tpu_custom_call.1} parent=47 // pred_fallthru
          _
        %s424 = sand.u32 %s57, 1
        %s425 = scalar_lea.sflag [#allocation3], %s424
        %s426 = sand.u32 %s57, 1
        %s427 = smul.addr %s426, 2
        %s428 = scalar_lea.vmem [#allocation2], %s427
        %p429 = pneg %p70
        %p430 = pneg %p67
        %s431 = sand.u32 %s35, 1
        %s432 = scalar_lea.sflag [#allocation6], %s431
        %s433 = sand.u32 %s85, 1
        %s434 = smul.addr %s433, 2
        %s435 = scalar_lea.vmem [#allocation5], %s434
        %p436 = pneg %p98
        %p437 = pneg %p95
        %p438 = pneg %p119
        %p439 = pneg %p116
        %s440 = sand.u32 %s35, 1
        %s441 = scalar_lea.sflag [#allocation9], %s440
        %s442 = sand.u32 %s132, 1
        %s443 = smul.addr %s442, 64
        %s444 = scalar_lea.vmem [#allocation8], %s443
        %p445 = pneg %p145
        %p446 = pneg %p142
        %p447 = pneg %p166
        %p448 = pneg %p163
        %p449 = pneg %p187
        %p450 = pneg %p184
        %p451 = pneg %p208
        %p452 = pneg %p205
        %p453 = pneg %p236
        %p454 = pneg %p233
        %s455 = sand.u32 %s223, 1
        %s456 = scalar_lea.sflag [#allocation4], %s455
        %s457 = sand.u32 %s223, 1
        %s458 = smul.addr %s457, 4
        %s459 = scalar_lea.vmem [#allocation11], %s458
        %p460 = pneg %p264
        %p461 = pneg %p261
        %s462 = sand.u32 %s251, 1
        %s463 = scalar_lea.sflag [#allocation13], %s462
        %s464 = sand.u32 %s251, 1
        %s465 = smul.addr %s464, 4
        %s466 = scalar_lea.vmem [#allocation12], %s465
        %v468 = vld [vmem:[%s388] sm:$0x3]
        %v469 = vld [vmem:[#allocation10] sm:$0xf]
        %v470 = vld [vmem:[#allocation10 + $0x4] sm:$0xf]
        %v471 = vld [vmem:[#allocation10 + $0x8] sm:$0xf]
        %v472 = vld [vmem:[#allocation10 + $0xc] sm:$0xf]
        %v473 = vld [vmem:[%s5] sm:$0x1]
        %v475 = vperm.slane %v473, 0
        %v481 = vunpack.c.l.b16 %v469
        %v482 = vunpack.c.l.b16 %v470
        %v483 = vunpack.c.l.b16 %v471
        %v484 = vunpack.c.l.b16 %v472
        %v485 = vpack.c.b16 %v482, %v481
        %v486 = vpack.c.b16 %v484, %v483
        %vm489 = vcmask 261120
        %v491 = vsel %vm489, %v468, 0
        %493 = vmatpush.bf16.msra.mxu0 0
        %494 = vmatpush.bf16.msra.mxu0 0
        %495 = vmatpush.bf16.msra.mxu0 0
        %496 = vmatpush.bf16.msra.mxu0 0
        %497 = vmatpush.bf16.msra.mxu0 0
        %498 = vmatpush.bf16.msra.mxu0 0
        %499 = vmatpush.bf16.msra.mxu0 %v486
        %500 = vmatpush.bf16.msra.mxu0 %v485
        %501 = vmatmul.bf16.gmra.mxu0 %v491
        %v502 = vpop.f32.mrf.mxu0
        %v503 = vadd.f32 %v475, %v502
        %v504 = vpop.f32.mrf.mxu0
        %505 = vdwg.mxu0
        %v506 = vxor.u32 %v503, 2147483648
        %v507 = vmul.f32 %v506, 1.442695
        %v508 = vpow.pop %v507
        %v509 = vadd.f32 %v508, 1.0
        %v510 = vrcp.pop %v509
        %v511 = vmul.f32 %v509, %v510
        %v512 = vsub.f32 1.0, %v511
        %v513 = vmul.f32 %v510, %v512
        %v514 = vadd.f32 %v510, %v513
        %vm515 = vweird.f32 %v509
        %vm516 = vweird.f32 %v510
        %vm517 = vmor %vm515, %vm516
        %v518 = vsel %vm517, %v510, %v514
        %v519 = vand.u32 2147483647, %v509
        %vm520 = vcmp.eq.f32.partialorder %v519, 8.507059e+37
        %v521 = vand.u32 %v509, 2147483648
        %v522 = vor.u32 1.1754944e-38, %v521
        %v523 = vsel %vm520, %v522, %v518
        %v524 = vmul.f32 1.0, %v523
        %v525 = vld [vmem:[%s6] sm:$0x1]
        %v527 = vperm.slane %v525, 0
        %v529 = vadd.f32 %v503, %v527
        %vm530 = vcmask 1043456
        %v531 = vsel %vm530, %v529, -inf
        %532 = vmax.xlane.f32.xlu0 %v531
        %v533 = vpop.xlane.xlu0 %532
        %v534 = vsub.f32 %v529, %v533
        %v535 = vmul.f32 %v534, 1.442695
        %v536 = vpow.pop %v535
        %v537 = vsel %vm530, %v536, 0.0
        %538 = vadd.xlane.f32.xlu0 %v537
        %v539 = vpop.xlane.xlu0 %538
        %v540 = vrcp.pop %v539
        %v541 = vmul.f32 %v536, %v540
        %v542 = vsub.f32 1.0, %v524
        %544 = vset.pattern.permute.xlu0 16
        %545 = vperm.xlu0 %544, %v542
        %v546 = vpop.permute.xlu0 %545
        %v548 = vmul.f32 %v541, %v546
        %549 = vst [vmem:[%s459] sm:$0xf] %v548
        %v550 = vld [vmem:[%s398] sm:$0x3]
        %v551 = vld [vmem:[#allocation7] sm:$0x7]
        %vm552 = vcmask 39936
        %v554 = vsel %vm552, %v550, 0
        %vm556 = vcmask 1041408
        %vm557 = vcmask 1042432
        %v558 = vsel %vm556, 4294967295, 65535
        %v559 = vsel %vm557, %v558, 0
        %v561 = vand.u32 %v551, %v559
        %563 = vmatpush.bf16.msra.mxu0 0
        %564 = vmatpush.bf16.msra.mxu0 0
        %565 = vmatpush.bf16.msra.mxu0 0
        %566 = vmatpush.bf16.msra.mxu0 0
        %567 = vmatpush.bf16.msra.mxu0 0
        %568 = vmatpush.bf16.msra.mxu0 0
        %569 = vmatpush.bf16.msra.mxu0 0
        %570 = vmatpush.bf16.msra.mxu0 %v561
        %571 = vmatmul.bf16.gmra.mxu0 %v554
        %v572 = vpop.f32.mrf.mxu0
        %v573 = vadd.f32 0.0, %v572
        %v574 = vpop.f32.mrf.mxu0
        %575 = vdwg.mxu0
        %577 = vset.pattern.permute.xlu0 16
        %578 = vperm.xlu0 %577, %v524
        %v579 = vpop.permute.xlu0 %578
        %v581 = vmul.f32 %v573, %v579
        %v582 = vpack.c.bf16 %v581, %v581
        %v583 = vld [vmem:[%s413] sm:$0xf]
        %v584 = vld [vmem:[%s413 + $0x4] sm:$0xf]
        %v585 = vld [vmem:[%s413 + $0x8] sm:$0xf]
        %v586 = vld [vmem:[%s413 + $0xc] sm:$0xf]
        %v587 = vld [vmem:[%s413 + $0x10] sm:$0xf]
        %v588 = vld [vmem:[%s413 + $0x14] sm:$0xf]
        %v589 = vld [vmem:[%s413 + $0x18] sm:$0xf]
        %v590 = vld [vmem:[%s413 + $0x1c] sm:$0xf]
        %v591 = vld [vmem:[%s413 + $0x20] sm:$0xf]
        %v592 = vld [vmem:[%s413 + $0x24] sm:$0xf]
        %v593 = vld [vmem:[%s413 + $0x28] sm:$0xf]
        %v594 = vld [vmem:[%s413 + $0x2c] sm:$0xf]
        %v595 = vld [vmem:[%s413 + $0x30] sm:$0xf]
        %v596 = vld [vmem:[%s413 + $0x34] sm:$0xf]
        %v597 = vld [vmem:[%s413 + $0x38] sm:$0xf]
        %v598 = vld [vmem:[%s413 + $0x3c] sm:$0xf]
        %v615 = vunpack.c.l.b16 %v583
        %v616 = vunpack.c.l.b16 %v584
        %v617 = vunpack.c.l.b16 %v585
        %v618 = vunpack.c.l.b16 %v586
        %v619 = vunpack.c.l.b16 %v587
        %v620 = vunpack.c.l.b16 %v588
        %v621 = vunpack.c.l.b16 %v589
        %v622 = vunpack.c.l.b16 %v590
        %v623 = vunpack.c.l.b16 %v591
        %v624 = vunpack.c.l.b16 %v592
        %v625 = vunpack.c.l.b16 %v593
        %v626 = vunpack.c.l.b16 %v594
        %v627 = vunpack.c.l.b16 %v595
        %v628 = vunpack.c.l.b16 %v596
        %v629 = vunpack.c.l.b16 %v597
        %v630 = vunpack.c.l.b16 %v598
        %v631 = vpack.c.b16 %v616, %v615
        %v632 = vpack.c.b16 %v618, %v617
        %v633 = vpack.c.b16 %v620, %v619
        %v634 = vpack.c.b16 %v622, %v621
        %v635 = vpack.c.b16 %v624, %v623
        %v636 = vpack.c.b16 %v626, %v625
        %v637 = vpack.c.b16 %v628, %v627
        %v638 = vpack.c.b16 %v630, %v629
        %647 = vmatpush.bf16.msra.mxu0 %v638
        %648 = vmatpush.bf16.msra.mxu0 %v637
        %649 = vmatpush.bf16.msra.mxu0 %v636
        %650 = vmatpush.bf16.msra.mxu0 %v635
        %651 = vmatpush.bf16.msra.mxu0 %v634
        %652 = vmatpush.bf16.msra.mxu0 %v633
        %653 = vmatpush.bf16.msra.mxu0 %v632
        %654 = vmatpush.bf16.msra.mxu0 %v631
        %655 = vmatmul.bf16.gmra.mxu0 %v582
        %v656 = vpop.f32.mrf.mxu0
        %v657 = vadd.f32 0.0, %v656
        %v658 = vpop.f32.mrf.mxu0
        %659 = vdwg.mxu0
        %660 = vst [vmem:[%s466] sm:$0xf] %v657
        %s661 = sand.u32 %s223, 1
        %s662 = scalar_lea.sflag [#allocation4], %s661
        %s663 = sand.u32 %s223, 1
        %s664 = smul.addr %s663, 4
        %s665 = scalar_lea.vmem [#allocation11], %s664
        %s666 = sand.u32 %s251, 1
        %s667 = scalar_lea.sflag [#allocation13], %s666
        %s668 = sand.u32 %s251, 1
        %s669 = smul.addr %s668, 4
        %s670 = scalar_lea.vmem [#allocation12], %s669
        // Predicated region
        $region69: #{tpu_custom_call.1} parent=47 // pred_check
          %p671 = pneg %p233
        $region70: #{tpu_custom_call.1} parent=47 // pred_check_branch
          %673 = sbr.rel (%p671) target = $region72
        $region71: #{tpu_custom_call.1} parent=47 // pred_region
          %675 = vsyncadd %s662, 0
          %s676 = sadd.s32 %s40, %s39
          %s677 = smul.addr %s676, 4
          %s678 = scalar_lea.hbm %s7, %s677
          %s680 = sshll.u32 %s665, 4
          %s681 = int_to_ptr.vmem [resolvable:$true] %s680
          %s682 = sshll.u32 %s678, 4
          %s683 = int_to_ptr.hbm [resolvable:$true] %s682
          %685 = dma.vmem_to_hbm [thread:$0]  %s681, 64, %s683, %s662
        $region72: #{tpu_custom_call.1} parent=47 // pred_fallthru
          _
        // Predicated region
        $region73: #{tpu_custom_call.1} parent=47 // pred_check
          %p686 = pneg %p261
        $region74: #{tpu_custom_call.1} parent=47 // pred_check_branch
          %688 = sbr.rel (%p686) target = $region76
        $region75: #{tpu_custom_call.1} parent=47 // pred_region
          %690 = vsyncadd %s667, 0
          %s691 = sadd.s32 %s40, %s39
          %s692 = smul.addr %s691, 4
          %s693 = scalar_lea.hbm %s8, %s692
          %s695 = sshll.u32 %s670, 4
          %s696 = int_to_ptr.vmem [resolvable:$true] %s695
          %s697 = sshll.u32 %s693, 4
          %s698 = int_to_ptr.hbm [resolvable:$true] %s697
          %700 = dma.vmem_to_hbm [thread:$0]  %s696, 64, %s698, %s667
        $region76: #{tpu_custom_call.1} parent=47 // pred_fallthru
          _
      $region48: #{tpu_custom_call.1} parent=5 // pred_fallthru
        _
      %p701 = scmp.le.s32.totalorder 2, %s30
      // Predicated region
      $region77: #{tpu_custom_call.1} parent=5 // pred_check
        %p702 = pneg %p701
      $region78: #{tpu_custom_call.1} parent=5 // pred_check_branch
        %704 = sbr.rel (%p702) target = $region80
      $region79: #{tpu_custom_call.1} parent=5 // pred_region
        %s705 = ssub.s32 %s30, 2
        // Predicated region
        $region81: #{tpu_custom_call.1} parent=79 // pred_check
          %p706 = pneg %p239
        $region82: #{tpu_custom_call.1} parent=79 // pred_check_branch
          %708 = sbr.rel (%p706) target = $region84
        $region83: #{tpu_custom_call.1} parent=79 // pred_region
          %s709 = sand.u32 %s224, 1
          %s710 = scalar_lea.sflag [#allocation4], %s709
          %s711 = sand.u32 %s224, 1
          %s712 = smul.addr %s711, 4
          %s713 = scalar_lea.vmem [#allocation11], %s712
          %715 = dma.done %s710, 64
        $region84: #{tpu_custom_call.1} parent=79 // pred_fallthru
          _
        // Predicated region
        $region85: #{tpu_custom_call.1} parent=79 // pred_check
          %p716 = pneg %p267
        $region86: #{tpu_custom_call.1} parent=79 // pred_check_branch
          %718 = sbr.rel (%p716) target = $region88
        $region87: #{tpu_custom_call.1} parent=79 // pred_region
          %s719 = sand.u32 %s252, 1
          %s720 = scalar_lea.sflag [#allocation13], %s719
          %s721 = sand.u32 %s252, 1
          %s722 = smul.addr %s721, 4
          %s723 = scalar_lea.vmem [#allocation12], %s722
          %725 = dma.done %s720, 64
        $region88: #{tpu_custom_call.1} parent=79 // pred_fallthru
          _
      $region80: #{tpu_custom_call.1} parent=5 // pred_fallthru
        _
    $region6: #{tpu_custom_call.1} parent=1 // loop_footer
      %s34 = sadd.s32 1, %s30
    $region7: #{tpu_custom_call.1} parent=1 // loop_footer_branch
      %29 = sbr.rel target = $region3
    $region8: #{tpu_custom_call.1} parent=1 // loop_exit
      _
    %726 = vsyncpa [#allocation3], 1
    %s727 = scalar_lea.sflag [#allocation3], 1
    %728 = vsyncpa %s727, 1
    %729 = vsyncpa [#allocation6], 1
    %s730 = scalar_lea.sflag [#allocation6], 1
    %731 = vsyncpa %s730, 1
    %732 = vsyncpa [#allocation9], 1
    %s733 = scalar_lea.sflag [#allocation9], 1
    %734 = vsyncpa %s733, 1
    %735 = vsyncpa [#allocation4], 1
    %s736 = scalar_lea.sflag [#allocation4], 1
    %737 = vsyncpa %s736, 1
    %738 = vsyncpa [#allocation13], 1
    %s739 = scalar_lea.sflag [#allocation13], 1
    %740 = vsyncpa %s739, 1

</llo_original>
